<compile_context>
chip_gen: v7x
topology: tpu7x:2x2x1
jax: 0.10.0
libtpu: 0.0.40
codegen_flags: <defaults>
</compile_context>

<pallas_src>
import jax
import jax.numpy as jnp
from jax import lax
from jax.experimental import pallas as pl
from jax.experimental.pallas import tpu as pltpu


def _round_up(x, m):
    return (x + m - 1) // m * m


# ---------------------------------------------------------------------------
# Kernel 1: prediction-head transform  (dense -> GELU -> LayerNorm)
# ---------------------------------------------------------------------------
def transform_kernel(x_ref, w_ref, b_ref, g_ref, beta_ref, o_ref):
    # x: [tm, H] (producer dtype), w: [H_out, H_in] bf16 (torch layout, NOT
    # transposed) -> contraction over the hidden axis of both operands so every
    # weight DMA is row-contiguous.
    x = x_ref[...].astype(jnp.bfloat16)
    h = lax.dot_general(
        x, w_ref[...], (((1,), (1,)), ((), ())),
        preferred_element_type=jnp.float32,
    ) + b_ref[...]
    # tanh-approximate GELU: transcendental lands on the EUP slot (idle
    # otherwise) instead of a long erf polynomial on the VALU.
    h = jax.nn.gelu(h, approximate=True)
    # LayerNorm over the hidden dim (biased variance, eps = 1e-12), f32 math.
    mu = jnp.mean(h, axis=-1, keepdims=True)
    var = jnp.mean((h - mu) * (h - mu), axis=-1, keepdims=True)
    hn = (h - mu) * lax.rsqrt(var + 1e-12)
    o_ref[...] = (hn * g_ref[...] + beta_ref[...]).astype(o_ref.dtype)


# ---------------------------------------------------------------------------
# Kernel 2: decoder (tied-embedding projection to vocab) + output bias
# ---------------------------------------------------------------------------
def decoder_kernel(h_ref, w_ref, b_ref, o_ref):
    # h: [tm, H] bf16, w: [tv, H] bf16 (native [V, H] layout), b: [1, tv] f32.
    acc = lax.dot_general(
        h_ref[...], w_ref[...], (((1,), (1,)), ((), ())),
        preferred_element_type=jnp.float32,
    )
    o_ref[...] = (acc + b_ref[...]).astype(o_ref.dtype)


# ---------------------------------------------------------------------------
# One-time parameter prep: bf16 matmul operands + vocab padding, no transposes
# ---------------------------------------------------------------------------
def prepare_head_params(params, *, vocab_tile=512):
    H = params["dense_w"].shape[0]
    V = params["emb_w"].shape[0]
    Vp = _round_up(V, vocab_tile)
    emb_w = params["emb_w"]
    out_b = params["out_bias"]
    if Vp != V:
        # Zero padding is safe: the decoder's out_shape has exactly V columns,
        # so padded vocab rows/bias entries are never written back.
        emb_w = jnp.pad(emb_w, ((0, Vp - V), (0, 0)))
        out_b = jnp.pad(out_b, ((0, Vp - V),))
    return {
        "dense_w": params["dense_w"].astype(jnp.bfloat16),            # [H, H] (out, in)
        "dense_b": params["dense_b"].reshape(1, H).astype(jnp.float32),
        "ln_gamma": params["ln_gamma"].reshape(1, H).astype(jnp.float32),
        "ln_beta": params["ln_beta"].reshape(1, H).astype(jnp.float32),
        "emb_w": emb_w.astype(jnp.bfloat16),                          # [Vp, H]
        "out_bias": out_b.reshape(1, Vp).astype(jnp.float32),         # [1, Vp]
        "vocab": V,
        "vocab_tile": vocab_tile,
    }


def _transform_token_tile(T, cap):
    # >= 2 grid steps whenever T > 32 so v7x megacore has work on both cores.
    if T <= 32:
        return T
    half = _round_up(-(-T // 2), 16)
    return max(16, min(cap, half))


def _decoder_token_tile(T, cap):
    # Single full-extent block for small T; otherwise the (large) cap tile.
    return T if T <= cap else cap


def bert_lm_prediction_head(x, prepped, *,
                            decoder_token_tile=1024,
                            transform_token_tile=512,
                            logits_dtype=jnp.bfloat16):
    """x: [B, S, H] (any float dtype) -> logits [B, S, V] in `logits_dtype`."""
    B, S, H = x.shape
    T = B * S
    V = prepped["vocab"]
    tv = prepped["vocab_tile"]
    Vp = prepped["emb_w"].shape[0]
    assert Vp % tv == 0

    # Accept x in its producing dtype (no f32 upcast copy, no token padding).
    x2d = x.reshape(T, H)

    # --- transform: 1-D grid over token tiles; weights/biases stay resident --
    tm_t = _transform_token_tile(T, transform_token_tile)
    h = pl.pallas_call(
        transform_kernel,
        out_shape=jax.ShapeDtypeStruct((T, H), jnp.bfloat16),
        grid=(pl.cdiv(T, tm_t),),
        in_specs=[
            pl.BlockSpec((tm_t, H), lambda i: (i, 0)),
            pl.BlockSpec((H, H), lambda i: (0, 0)),
            pl.BlockSpec((1, H), lambda i: (0, 0)),
            pl.BlockSpec((1, H), lambda i: (0, 0)),
            pl.BlockSpec((1, H), lambda i: (0, 0)),
        ],
        out_specs=pl.BlockSpec((tm_t, H), lambda i: (i, 0)),
        compiler_params=pltpu.CompilerParams(
            dimension_semantics=("parallel",),
            vmem_limit_bytes=32 * 1024 * 1024,
        ),
    )(x2d, prepped["dense_w"], prepped["dense_b"],
      prepped["ln_gamma"], prepped["ln_beta"])

    # --- decoder: 2-D (token-tile, vocab-tile) grid, both axes parallel.
    #     h tile stays resident across the (innermost) vocab axis; emb_w is
    #     streamed in its native [V, H] layout (row-contiguous DMA).  Output is
    #     written directly as (T, V) — no padded logits buffer, no final slice.
    tm_d = _decoder_token_tile(T, decoder_token_tile)
    n_v_tiles = Vp // tv
    if n_v_tiles >= 3:
        w_spec = pl.BlockSpec((tv, H), lambda i, j: (j, 0),
                              pipeline_mode=pl.Buffered(3))
    else:
        w_spec = pl.BlockSpec((tv, H), lambda i, j: (j, 0))

    logits = pl.pallas_call(
        decoder_kernel,
        out_shape=jax.ShapeDtypeStruct((T, V), logits_dtype),
        grid=(pl.cdiv(T, tm_d), n_v_tiles),
        in_specs=[
            pl.BlockSpec((tm_d, H), lambda i, j: (i, 0)),
            w_spec,
            pl.BlockSpec((1, tv), lambda i, j: (0, j)),
        ],
        out_specs=pl.BlockSpec((tm_d, tv), lambda i, j: (i, j)),
        compiler_params=pltpu.CompilerParams(
            dimension_semantics=("parallel", "parallel"),
            vmem_limit_bytes=32 * 1024 * 1024,
        ),
    )(h, prepped["emb_w"], prepped["out_bias"])

    return logits.reshape(B, S, V)


# ---------------------------------------------------------------------------
# Pure-JAX reference (f32 end-to-end, exact-erf GELU) for correctness check
# ---------------------------------------------------------------------------
def reference(x, params):
    h = x @ params["dense_w"].T + params["dense_b"]
    h = h * 0.5 * (1.0 + lax.erf(h / jnp.sqrt(2.0)))
    mu = jnp.mean(h, axis=-1, keepdims=True)
    var = jnp.mean((h - mu) ** 2, axis=-1, keepdims=True)
    h = (h - mu) / jnp.sqrt(var + 1e-12)
    h = h * params["ln_gamma"] + params["ln_beta"]
    return h @ params["emb_w"].T + params["out_bias"]


if __name__ == "__main__":
    # Small shapes; V is deliberately NOT a multiple of the vocab tile so the
    # padded-weight / exact-(T,V)-output path is exercised (2 vocab tiles).
    B, S, H, V = 2, 8, 32, 1000

    key = jax.random.PRNGKey(0)
    kx, kw, kb, kg, kbe, ke, ko = jax.random.split(key, 7)

    x = jax.random.normal(kx, (B, S, H), dtype=jnp.float32)
    params = {
        "dense_w": 0.02 * jax.random.normal(kw, (H, H), dtype=jnp.float32),
        "dense_b": 0.02 * jax.random.normal(kb, (H,), dtype=jnp.float32),
        "ln_gamma": 1.0 + 0.02 * jax.random.normal(kg, (H,), dtype=jnp.float32),
        "ln_beta": 0.02 * jax.random.normal(kbe, (H,), dtype=jnp.float32),
        "emb_w": 0.02 * jax.random.normal(ke, (V, H), dtype=jnp.float32),
        "out_bias": 0.02 * jax.random.normal(ko, (V,), dtype=jnp.float32),
    }

    prepped = prepare_head_params(params, vocab_tile=512)
    out = jax.block_until_ready(bert_lm_prediction_head(x, prepped))
    ref = reference(x, params)

    assert out.shape == (B, S, V)
    # bf16 MXU operands + bf16 logits + tanh-GELU vs exact-erf reference:
    # observed error is ~1e-3 at these scales, well inside tolerance.
    err = float(jnp.max(jnp.abs(out.astype(jnp.float32) - ref)))
    assert jnp.allclose(out.astype(jnp.float32), ref, atol=1e-2, rtol=2e-2), err
    print("KERNEL_OK")
</pallas_src>

<mosaic_0001>
module attributes {stable_mosaic.version = 11 : i64} {
  func.func @transform_kernel(%arg0: i32, %arg1: memref<16x32xf32, #tpu.memory_space<vmem>>, %arg2: memref<32x32xbf16, #tpu.memory_space<vmem>>, %arg3: memref<1x32xf32, #tpu.memory_space<vmem>>, %arg4: memref<1x32xf32, #tpu.memory_space<vmem>>, %arg5: memref<1x32xf32, #tpu.memory_space<vmem>>, %arg6: memref<16x32xbf16, #tpu.memory_space<vmem>>) attributes {dimension_semantics = [#tpu.dimension_semantics<parallel>], iteration_bounds = array<i64: 1>, scalar_prefetch = 0 : i64, scratch_operands = 0 : i64, tpu.core_type = #tpu.core_type<tc>, window_params = [{transform_indices = @transform_0, window_bounds = array<i64: 16, 32>}, {pipeline_mode = #tpu.pipeline_mode<synchronous>, transform_indices = @transform_1, window_bounds = array<i64: 32, 32>}, {pipeline_mode = #tpu.pipeline_mode<synchronous>, transform_indices = @transform_2, window_bounds = array<i64: 1, 32>}, {pipeline_mode = #tpu.pipeline_mode<synchronous>, transform_indices = @transform_3, window_bounds = array<i64: 1, 32>}, {pipeline_mode = #tpu.pipeline_mode<synchronous>, transform_indices = @transform_4, window_bounds = array<i64: 1, 32>}, {transform_indices = @transform_5, window_bounds = array<i64: 16, 32>}]} {
    %c0 = arith.constant 0 : index
    %c0_0 = arith.constant 0 : index
    %0 = vector.load %arg1[%c0, %c0_0] : memref<16x32xf32, #tpu.memory_space<vmem>>, vector<16x32xf32>
    %1 = arith.truncf %0 : vector<16x32xf32> to vector<16x32xbf16>
    %c0_1 = arith.constant 0 : index
    %c0_2 = arith.constant 0 : index
    %2 = vector.load %arg2[%c0_1, %c0_2] : memref<32x32xbf16, #tpu.memory_space<vmem>>, vector<32x32xbf16>
    %cst = arith.constant dense<0.000000e+00> : vector<16x32xf32>
    %3 = tpu.matmul %1, %2, %cst {dimension_numbers = #tpu.dot_dimension_numbers<[1], [1], [0], [0], [0, 0, 1, 0], [], []>} : vector<16x32xbf16>, vector<32x32xbf16>, vector<16x32xf32> -> vector<16x32xf32>
    %c0_3 = arith.constant 0 : index
    %c0_4 = arith.constant 0 : index
    %4 = vector.load %arg3[%c0_3, %c0_4] : memref<1x32xf32, #tpu.memory_space<vmem>>, vector<1x32xf32>
    %5 = vector.broadcast %4 : vector<1x32xf32> to vector<16x32xf32>
    %6 = arith.addf %3, %5 : vector<16x32xf32>
    %7 = arith.mulf %6, %6 : vector<16x32xf32>
    %8 = arith.mulf %6, %7 : vector<16x32xf32>
    %cst_5 = arith.constant 4.471500e-02 : f32
    %9 = vector.broadcast %cst_5 : f32 to vector<16x32xf32>
    %10 = arith.mulf %9, %8 : vector<16x32xf32>
    %11 = arith.addf %6, %10 : vector<16x32xf32>
    %cst_6 = arith.constant 0.797884583 : f32
    %12 = vector.broadcast %cst_6 : f32 to vector<16x32xf32>
    %13 = arith.mulf %12, %11 : vector<16x32xf32>
    %14 = math.tanh %13 : vector<16x32xf32>
    %cst_7 = arith.constant 1.000000e+00 : f32
    %15 = vector.broadcast %cst_7 : f32 to vector<16x32xf32>
    %16 = arith.addf %15, %14 : vector<16x32xf32>
    %cst_8 = arith.constant 5.000000e-01 : f32
    %17 = vector.broadcast %cst_8 : f32 to vector<16x32xf32>
    %18 = arith.mulf %17, %16 : vector<16x32xf32>
    %19 = arith.mulf %6, %18 : vector<16x32xf32>
    %cst_9 = arith.constant dense<0.000000e+00> : vector<16xf32>
    %20 = vector.multi_reduction <add>, %19, %cst_9 [1] : vector<16x32xf32> to vector<16xf32>
    %21 = vector.shape_cast %20 : vector<16xf32> to vector<16x1xf32>
    %cst_10 = arith.constant 3.200000e+01 : f32
    %22 = vector.broadcast %cst_10 : f32 to vector<16x1xf32>
    %23 = arith.divf %21, %22 : vector<16x1xf32>
    %24 = vector.broadcast %23 : vector<16x1xf32> to vector<16x32xf32>
    %25 = arith.subf %19, %24 : vector<16x32xf32>
    %26 = vector.broadcast %23 : vector<16x1xf32> to vector<16x32xf32>
    %27 = arith.subf %19, %26 : vector<16x32xf32>
    %28 = arith.mulf %25, %27 : vector<16x32xf32>
    %cst_11 = arith.constant dense<0.000000e+00> : vector<16xf32>
    %29 = vector.multi_reduction <add>, %28, %cst_11 [1] : vector<16x32xf32> to vector<16xf32>
    %30 = vector.shape_cast %29 : vector<16xf32> to vector<16x1xf32>
    %cst_12 = arith.constant 3.200000e+01 : f32
    %31 = vector.broadcast %cst_12 : f32 to vector<16x1xf32>
    %32 = arith.divf %30, %31 : vector<16x1xf32>
    %33 = vector.broadcast %23 : vector<16x1xf32> to vector<16x32xf32>
    %34 = arith.subf %19, %33 : vector<16x32xf32>
    %cst_13 = arith.constant 9.99999996E-13 : f32
    %35 = vector.broadcast %cst_13 : f32 to vector<16x1xf32>
    %36 = arith.addf %32, %35 : vector<16x1xf32>
    %37 = math.rsqrt %36 : vector<16x1xf32>
    %38 = vector.broadcast %37 : vector<16x1xf32> to vector<16x32xf32>
    %39 = arith.mulf %34, %38 : vector<16x32xf32>
    %c0_14 = arith.constant 0 : index
    %c0_15 = arith.constant 0 : index
    %40 = vector.load %arg4[%c0_14, %c0_15] : memref<1x32xf32, #tpu.memory_space<vmem>>, vector<1x32xf32>
    %41 = vector.broadcast %40 : vector<1x32xf32> to vector<16x32xf32>
    %42 = arith.mulf %39, %41 : vector<16x32xf32>
    %c0_16 = arith.constant 0 : index
    %c0_17 = arith.constant 0 : index
    %43 = vector.load %arg5[%c0_16, %c0_17] : memref<1x32xf32, #tpu.memory_space<vmem>>, vector<1x32xf32>
    %44 = vector.broadcast %43 : vector<1x32xf32> to vector<16x32xf32>
    %45 = arith.addf %42, %44 : vector<16x32xf32>
    %46 = arith.truncf %45 : vector<16x32xf32> to vector<16x32xbf16>
    %c0_18 = arith.constant 0 : index
    %c0_19 = arith.constant 0 : index
    %47 = vector.load %arg6[%c0_18, %c0_19] : memref<16x32xbf16, #tpu.memory_space<vmem>>, vector<16x32xbf16>
    tpu.vector_store %arg6[%c0_18, %c0_19], %46 {strides = array<i32>} : memref<16x32xbf16, #tpu.memory_space<vmem>>, vector<16x32xbf16>,
    return
  }
  func.func @transform_0(%arg0: i32) -> (i32, i32) {
    %c0_i32 = arith.constant 0 : i32
    %c0_i32_0 = arith.constant 0 : i32
    return %arg0, %c0_i32 : i32, i32
  }
  func.func @transform_1(%arg0: i32) -> (i32, i32) {
    %c0_i32 = arith.constant 0 : i32
    %c0_i32_0 = arith.constant 0 : i32
    %c0_i32_1 = arith.constant 0 : i32
    return %c0_i32, %c0_i32_0 : i32, i32
  }
  func.func @transform_2(%arg0: i32) -> (i32, i32) {
    %c0_i32 = arith.constant 0 : i32
    %c0_i32_0 = arith.constant 0 : i32
    %c0_i32_1 = arith.constant 0 : i32
    return %c0_i32, %c0_i32_0 : i32, i32
  }
  func.func @transform_3(%arg0: i32) -> (i32, i32) {
    %c0_i32 = arith.constant 0 : i32
    %c0_i32_0 = arith.constant 0 : i32
    %c0_i32_1 = arith.constant 0 : i32
    return %c0_i32, %c0_i32_0 : i32, i32
  }
  func.func @transform_4(%arg0: i32) -> (i32, i32) {
    %c0_i32 = arith.constant 0 : i32
    %c0_i32_0 = arith.constant 0 : i32
    %c0_i32_1 = arith.constant 0 : i32
    return %c0_i32, %c0_i32_0 : i32, i32
  }
  func.func @transform_5(%arg0: i32) -> (i32, i32) {
    %c0_i32 = arith.constant 0 : i32
    %c0_i32_0 = arith.constant 0 : i32
    return %arg0, %c0_i32 : i32, i32
  }
}

</mosaic_0001>

<llo_original>
// kernel: tpu_custom_call.1
$region0: #{tpu_custom_call.1}
  #allocation0 [shape = 'u32[]', space=smem, size = 0x4, offset = 0x4, fixed_abs, tag = 'smem constant byte address 0x4 - core index']
  #allocation1 [shape = 'u32[144,128]{1,0:T(1,128)}', space=vmem, size = 0x12000, scoped, tag = 'internal scratch']
  %s0 = inlined_call_operand.hbm [shape: f32[16,32], index: 0, kind: input, shape index: {}]
  %s1 = inlined_call_operand.hbm [shape: bf16[32,32], index: 1, kind: input, shape index: {}]
  %s2 = inlined_call_operand.vmem [shape: f32[1,32], index: 2, kind: input, shape index: {}]
  %s3 = inlined_call_operand.vmem [shape: f32[1,32], index: 3, kind: input, shape index: {}]
  %s4 = inlined_call_operand.vmem [shape: f32[1,32], index: 4, kind: input, shape index: {}]
  %s5 = inlined_call_operand.hbm [shape: bf16[16,32], index: 5, kind: output, shape index: {}]
  %s6 = sld [smem:[#allocation0]]
  $region38: #{tpu_custom_call.1} parent=0
    _
  %s8 = ssub.s32 1, %s6
  %s9 = scalar_select 0, %s8, %s6
  $region1: #{tpu_custom_call.1} parent=0
    #allocation2 [shape = 'u8[8192]{0}', space=vmem, size = 0x2000, scoped, tag = 'input window, operand 0, single buffered']
    #allocation3 [shape = 's32[1]{0}', space=sflag, size = 0x4, scoped, tag = 'scoped memory for tpu_custom_call.1']
    #allocation4 [shape = 's32[1]{0}', space=sflag, size = 0x4, scoped, tag = 'scoped memory for tpu_custom_call.1']
    #allocation5 [shape = 'u8[8192]{0}', space=vmem, size = 0x2000, scoped, tag = 'input window, operand 1, single buffered']
    #allocation6 [shape = 's32[1]{0}', space=sflag, size = 0x4, scoped, tag = 'scoped memory for tpu_custom_call.1']
    #allocation7 [shape = 'u8[4096]{0}', space=vmem, size = 0x1000, scoped, tag = 'output window, operand 0, single buffered']
    %10 = vsyncpa [#allocation3], 0
    %11 = vsyncpa [#allocation6], 0
    %12 = vsyncpa [#allocation4], 0
    // Predicated region
    $region2: #{tpu_custom_call.1} parent=1 // pred_check
      _
    $region3: #{tpu_custom_call.1} parent=1 // pred_check_branch
      %14 = sbr.rel (0) target = $region5
    $region4: #{tpu_custom_call.1} parent=1 // pred_region
      %s16 = ssub.s32 256, 256
      %17 = vsyncadd [#allocation3], %s16
      %s18 = sshll.u32 [#allocation2], 4
      %s19 = int_to_ptr.vmem [resolvable:$true] %s18
      %24 = dma.hbm_to_vmem [thread:$0]  %s0, 256, %s19, [#allocation3], 128, 128, 8
    $region5: #{tpu_custom_call.1} parent=1 // pred_fallthru
      _
    // Predicated region
    $region6: #{tpu_custom_call.1} parent=1 // pred_check
      _
    $region7: #{tpu_custom_call.1} parent=1 // pred_check_branch
      %26 = sbr.rel (0) target = $region9
    $region8: #{tpu_custom_call.1} parent=1 // pred_region
      %s28 = ssub.s32 256, 256
      %29 = vsyncadd [#allocation6], %s28
      %s30 = sshll.u32 [#allocation5], 4
      %s31 = int_to_ptr.vmem [resolvable:$true] %s30
      %36 = dma.hbm_to_vmem [thread:$0]  %s1, 256, %s31, [#allocation6], 64, 64, 4
    $region9: #{tpu_custom_call.1} parent=1 // pred_fallthru
      _
    // Predicated region
    $region10: #{tpu_custom_call.1} parent=1 // pred_check
      _
    $region11: #{tpu_custom_call.1} parent=1 // pred_check_branch
      %38 = sbr.rel (0) target = $region13
    $region12: #{tpu_custom_call.1} parent=1 // pred_region
      _
    $region13: #{tpu_custom_call.1} parent=1 // pred_fallthru
      _
    // Predicated region
    $region14: #{tpu_custom_call.1} parent=1 // pred_check
      _
    $region15: #{tpu_custom_call.1} parent=1 // pred_check_branch
      %40 = sbr.rel (0) target = $region17
    $region16: #{tpu_custom_call.1} parent=1 // pred_region
      _
    $region17: #{tpu_custom_call.1} parent=1 // pred_fallthru
      _
    // Predicated region
    $region18: #{tpu_custom_call.1} parent=1 // pred_check
      _
    $region19: #{tpu_custom_call.1} parent=1 // pred_check_branch
      %42 = sbr.rel (0) target = $region21
    $region20: #{tpu_custom_call.1} parent=1 // pred_region
      _
    $region21: #{tpu_custom_call.1} parent=1 // pred_fallthru
      _
    // Predicated region
    $region22: #{tpu_custom_call.1} parent=1 // pred_check
      _
    $region23: #{tpu_custom_call.1} parent=1 // pred_check_branch
      %44 = sbr.rel (0) target = $region25
    $region24: #{tpu_custom_call.1} parent=1 // pred_region
      %45 = dma.done [#allocation3], 256
    $region25: #{tpu_custom_call.1} parent=1 // pred_fallthru
      _
    // Predicated region
    $region26: #{tpu_custom_call.1} parent=1 // pred_check
      _
    $region27: #{tpu_custom_call.1} parent=1 // pred_check_branch
      %47 = sbr.rel (0) target = $region29
    $region28: #{tpu_custom_call.1} parent=1 // pred_region
      %48 = dma.done [#allocation6], 256
    $region29: #{tpu_custom_call.1} parent=1 // pred_fallthru
      _
    %v50 = vld [vmem:[#allocation2] sm:$0xff]
    %v51 = vld [vmem:[#allocation2 + $0x8] sm:$0xff]
    %v52 = vpack.c.bf16 %v51, %v50
    %v53 = vld [vmem:[#allocation5] sm:$0xf]
    %v54 = vld [vmem:[#allocation5 + $0x4] sm:$0xf]
    %v55 = vld [vmem:[#allocation5 + $0x8] sm:$0xf]
    %v56 = vld [vmem:[#allocation5 + $0xc] sm:$0xf]
    %v57 = vld [vmem:[%s2] sm:$0x1]
    %v59 = vlaneseq
    %v60 = vshrl.u32 %v59, 7
    %v61 = vsub.s32 0, %v60
    %v62 = vrot.slane %v57, %v61
    %v68 = vunpack.c.l.b16 %v53
    %v69 = vunpack.c.l.b16 %v54
    %v70 = vunpack.c.l.b16 %v55
    %v71 = vunpack.c.l.b16 %v56
    %v72 = vpack.c.b16 %v69, %v68
    %v73 = vpack.c.b16 %v71, %v70
    %vm74 = vcmask 261120
    %v76 = vsel %vm74, %v52, 0
    %v79 = vsel %vm74, %v72, 0
    %v82 = vsel %vm74, %v73, 0
    %84 = vmatprep.subr.bf16.mxu0 0
    %85 = vmatpush1.bf16.xpose.msra.mxu0 %v79
    %86 = vmatprep.subr.bf16.mxu0 0
    %87 = vmatpush1.bf16.xpose.msra.mxu0 %v82
    %88 = vmatprep.subr.bf16.mxu0 0
    %89 = vmatpush1.bf16.xpose.msra.mxu0 0
    %90 = vmatprep.subr.bf16.mxu0 0
    %91 = vmatpush1.bf16.xpose.msra.mxu0 0
    %92 = vmatprep.subr.bf16.mxu0 0
    %93 = vmatpush1.bf16.xpose.msra.mxu0 0
    %94 = vmatprep.subr.bf16.mxu0 0
    %95 = vmatpush1.bf16.xpose.msra.mxu0 0
    %96 = vmatprep.subr.bf16.mxu0 0
    %97 = vmatpush1.bf16.xpose.msra.mxu0 0
    %98 = vmatprep.subr.bf16.mxu0 0
    %99 = vmatpush1.bf16.xpose.msra.mxu0 0
    %100 = vmatprep.subr.bf16.mxu0 0
    %101 = vmatpush1.bf16.xpose.msra.mxu0 0
    %102 = vmatprep.subr.bf16.mxu0 0
    %103 = vmatpush1.bf16.xpose.msra.mxu0 0
    %104 = vmatprep.subr.bf16.mxu0 0
    %105 = vmatpush1.bf16.xpose.msra.mxu0 0
    %106 = vmatprep.subr.bf16.mxu0 0
    %107 = vmatpush1.bf16.xpose.msra.mxu0 0
    %108 = vmatprep.subr.bf16.mxu0 0
    %109 = vmatpush1.bf16.xpose.msra.mxu0 0
    %110 = vmatprep.subr.bf16.mxu0 0
    %111 = vmatpush1.bf16.xpose.msra.mxu0 0
    %112 = vmatprep.subr.bf16.mxu0 0
    %113 = vmatpush1.bf16.xpose.msra.mxu0 0
    %114 = vmatprep.subr.bf16.mxu0 0
    %115 = vmatpush1.bf16.xpose.msra.mxu0 0
    %116 = vmatprep.mubr.bf16.mxu0 0
    %117 = vmatmul.mubr.bf16.gmra.mrb[0].mxu0 %v76
    %v118 = vpop.f32.mrb[0].mxu0
    %v119 = vadd.f32 %v62, %v118
    %v120 = vpop.f32.mrb[0].mxu0
    %v121 = vpop.f32.mrb[0].mxu0
    %v122 = vadd.f32 %v62, %v121
    %v123 = vpop.f32.mrb[0].mxu0
    %124 = vdwg.mxu0
    %v125 = vmul.f32 %v119, %v119
    %v126 = vmul.f32 %v122, %v122
    %v127 = vmul.f32 %v119, %v125
    %v128 = vmul.f32 %v122, %v126
    %v129 = vmul.f32 %v127, 0.044715
    %v130 = vmul.f32 %v128, 0.044715
    %v131 = vadd.f32 %v119, %v129
    %v132 = vadd.f32 %v122, %v130
    %v133 = vmul.f32 %v131, 0.7978846
    %v134 = vmul.f32 %v132, 0.7978846
    %v135 = vtanh.pop %v133
    %v136 = vtanh.pop %v134
    %v137 = vadd.f32 %v135, 1.0
    %v138 = vadd.f32 %v136, 1.0
    %v139 = vmul.f32 %v137, 0.5
    %v140 = vmul.f32 %v138, 0.5
    %v141 = vmul.f32 %v119, %v139
    %v142 = vmul.f32 %v122, %v140
    %v143 = vsel %vm74, %v141, 0.0
    %144 = vadd.xlane.f32.xlu0 %v143
    %v145 = vpop.xlane.xlu0 %144
    %v146 = vsel %vm74, %v142, 0.0
    %147 = vadd.xlane.f32.xlu0 %v146
    %v148 = vpop.xlane.xlu0 %147
    %v149 = vrcp.pop 32.0
    %v150 = vmul.f32 %v145, %v149
    %v151 = vmul.f32 %v148, %v149
    %v152 = vsub.f32 %v141, %v150
    %v153 = vsub.f32 %v142, %v151
    %v154 = vmul.f32 %v152, %v152
    %v155 = vmul.f32 %v153, %v153
    %v156 = vsel %vm74, %v154, 0.0
    %157 = vadd.xlane.f32.xlu0 %v156
    %v158 = vpop.xlane.xlu0 %157
    %v159 = vsel %vm74, %v155, 0.0
    %160 = vadd.xlane.f32.xlu0 %v159
    %v161 = vpop.xlane.xlu0 %160
    %v162 = vmul.f32 %v158, %v149
    %v163 = vmul.f32 %v161, %v149
    %v164 = vadd.f32 %v162, 1e-12
    %v165 = vadd.f32 %v163, 1e-12
    %v166 = vrsqrt.pop %v164
    %v167 = vrsqrt.pop %v165
    %v168 = vmul.f32 %v152, %v166
    %v169 = vmul.f32 %v153, %v167
    %v170 = vld [vmem:[%s3] sm:$0x1]
    %v172 = vlaneseq
    %v173 = vshrl.u32 %v172, 7
    %v174 = vsub.s32 0, %v173
    %v175 = vrot.slane %v170, %v174
    %v177 = vmul.f32 %v168, %v175
    %v178 = vmul.f32 %v169, %v175
    %v179 = vld [vmem:[%s4] sm:$0x1]
    %v181 = vlaneseq
    %v182 = vshrl.u32 %v181, 7
    %v183 = vsub.s32 0, %v182
    %v184 = vrot.slane %v179, %v183
    %v186 = vadd.f32 %v177, %v184
    %v187 = vadd.f32 %v178, %v184
    %v188 = vpack.c.bf16 %v187, %v186
    %v190 = vunpack.c.l.b16 %v188
    %v191 = vunpack.c.h.b16 %v188
    %v192 = vpack.c.b16 %v190, %v190
    %v193 = vpack.c.b16 %v191, %v191
    %vm196 = vcmask 257024
    %197 = vst.msk [vmem:[#allocation7] sm:$0xf] %vm196, %v192
    %198 = vst.msk [vmem:[#allocation7 + $0x4] sm:$0xf] %vm196, %v193
    // Predicated region
    $region30: #{tpu_custom_call.1} parent=1 // pred_check
      _
    $region31: #{tpu_custom_call.1} parent=1 // pred_check_branch
      %200 = sbr.rel (0) target = $region33
    $region32: #{tpu_custom_call.1} parent=1 // pred_region
      %s202 = ssub.s32 128, 128
      %203 = vsyncadd [#allocation4], %s202
      %s204 = sshll.u32 [#allocation7], 4
      %s205 = int_to_ptr.vmem [resolvable:$true] %s204
      %210 = dma.vmem_to_hbm [thread:$0]  %s205, 128, %s5, [#allocation4], 64, 64, 4
    $region33: #{tpu_custom_call.1} parent=1 // pred_fallthru
      _
    // Predicated region
    $region34: #{tpu_custom_call.1} parent=1 // pred_check
      _
    $region35: #{tpu_custom_call.1} parent=1 // pred_check_branch
      %212 = sbr.rel (0) target = $region37
    $region36: #{tpu_custom_call.1} parent=1 // pred_region
      %213 = dma.done [#allocation4], 128
    $region37: #{tpu_custom_call.1} parent=1 // pred_fallthru
      _
    %214 = vsyncpa [#allocation3], 1
    %215 = vsyncpa [#allocation6], 1
    %216 = vsyncpa [#allocation4], 1

</llo_original>
